<compile_context>
chip_gen: v6e
topology: v6e:2x2x1
jax: 0.10.0
libtpu: 0.0.40
codegen_flags: <defaults>
</compile_context>

<pallas_src>
import functools

import jax
import jax.numpy as jnp
import numpy as np
from jax import lax
from jax.experimental import pallas as pl
from jax.experimental.pallas import tpu as pltpu


# ---------------------------------------------------------------------------
# Pass 1: per-row squared norms + analytic bandwidth statistics, O(nD).
#   sum_ij ||x_i - x_j||^2 = 2*n*sum_i ||x_i||^2 - 2*||sum_i x_i||^2
# ---------------------------------------------------------------------------
def _bw_stats_kernel(x_ref, stats_ref, norms_ref, csum_ref, *, n):
    i = pl.program_id(0)

    @pl.when(i == 0)
    def _():
        stats_ref[...] = jnp.zeros_like(stats_ref)
        csum_ref[...] = jnp.zeros_like(csum_ref)

    x = x_ref[...]                                            # (tile1, Dp) f32
    nrm = jnp.sum(x * x, axis=1, keepdims=True)               # (tile1, 1)
    norms_ref[...] = nrm
    stats_ref[...] = stats_ref[...] + jnp.sum(nrm, keepdims=True)      # (1,1)
    csum_ref[...] = csum_ref[...] + jnp.sum(x, axis=0, keepdims=True)  # (1,Dp)

    @pl.when(i == pl.num_programs(0) - 1)
    def _():
        cs = csum_ref[...]
        stats_ref[...] = (2.0 * float(n)) * stats_ref[...] - 2.0 * jnp.sum(
            cs * cs, keepdims=True)


# ---------------------------------------------------------------------------
# Pass 2: one upper-triangular block pair per grid step.
# ---------------------------------------------------------------------------
def _mmd_rbf_pair_kernel(ib_ref, jb_ref, coefs_ref, asq_ref, bsq_ref,
                         rows_ref, cols_ref, out_ref, *,
                         batch, tile, kernel_num, pow2_path, scalar_sign):
    p = pl.program_id(0)
    i = ib_ref[p]                      # row block index (scalar, SMEM)
    j = jb_ref[p]                      # col block index (scalar, SMEM)

    a = rows_ref[...]                  # (tile, Dp)  bf16 or f32
    b = cols_ref[...]                  # (tile, Dp)
    # Gram block on the MXU, contracting the last dim (A . B^T, no transpose).
    gram = lax.dot_general(a, b, (((1,), (1,)), ((), ())),
                           preferred_element_type=jnp.float32)  # (tile, tile)

    a_sq = asq_ref[...]                # (tile, 1) f32, precomputed in Pass 1
    b_sq = bsq_ref[0]                  # (1, tile) f32, precomputed in Pass 1
    l2 = jnp.maximum(a_sq + b_sq - 2.0 * gram, 0.0)

    if pow2_path:
        # kernel_mul == 2: one exp per element (EUP), remaining kernels via
        # repeated squaring on the VPU.  coefs_ref[0] = -1 / bw_max.
        e = jnp.exp(l2 * coefs_ref[0])
        ksum = e
        t = e
        for _ in range(kernel_num - 1):
            t = t * t
            ksum = ksum + t
    else:
        ksum = jnp.exp(l2 * coefs_ref[0])
        for q in range(1, kernel_num):
            ksum = ksum + jnp.exp(l2 * coefs_ref[q])

    pair_w = jnp.where(i == j, 1.0, 2.0)   # upper-triangular pair weight

    if scalar_sign:
        # Every block lies entirely inside one quadrant -> scalar sign.
        same = (i * tile < batch) == (j * tile < batch)
        sgn = jnp.where(same, 1.0, -1.0)
        part = jnp.sum(ksum, axis=0, keepdims=True) * (sgn * pair_w)
    else:
        # Block may straddle the source/target boundary -> per-element sign.
        r = lax.broadcasted_iota(jnp.int32, (tile, 1), 0) + i * tile
        c = lax.broadcasted_iota(jnp.int32, (1, tile), 1) + j * tile
        sgn = jnp.where((r < batch) == (c < batch), 1.0, -1.0)
        part = jnp.sum(sgn * ksum, axis=0, keepdims=True) * pair_w

    out_ref[...] = part.reshape(1, 1, tile)   # lane-dense per-pair partial


# ---------------------------------------------------------------------------
# Linear branch: tiled per-column mean difference + dot.
# ---------------------------------------------------------------------------
def _mmd_linear_kernel(src_ref, tgt_ref, out_ref, acc_ref, *, batch):
    i = pl.program_id(0)

    @pl.when(i == 0)
    def _():
        acc_ref[...] = jnp.zeros_like(acc_ref)

    diff = src_ref[...] - tgt_ref[...]
    acc_ref[...] = acc_ref[...] + jnp.sum(diff, axis=0, keepdims=True)

    @pl.when(i == pl.num_programs(0) - 1)
    def _():
        delta = acc_ref[...] * (1.0 / float(batch))
        out_ref[...] = jnp.sum(delta * delta, keepdims=True)


# ---------------------------------------------------------------------------
# Sizing helpers.
# ---------------------------------------------------------------------------
def _vmem_limit_bytes():
    try:
        info = pltpu.get_tpu_info()
        cap = int(getattr(info, "vmem_capacity_bytes", 64 * 1024 * 1024))
    except Exception:
        cap = 64 * 1024 * 1024
    # ~3/4 of physical VMEM, capped; leaves headroom for compiler scratch.
    return max(32 * 1024 * 1024, min((cap * 3) // 4, 100 * 1024 * 1024))


def _pick_rows_tile(rows, d, itemsize, budget, cap=1024):
    """Largest multiple-of-8 divisor of `rows` whose double-buffered slab fits."""
    best = None
    t = 8
    while t <= min(cap, rows):
        if rows % t == 0 and 2 * t * d * itemsize <= budget:
            best = t
        t += 8
    return best if best is not None else rows


def _pick_pair_tile(batch, n, d, itemsize, budget, cap=1024):
    """Tile for Pass 2 (prefers tiles dividing `batch` -> scalar quadrant sign)."""
    def fits(t):
        slabs = 2 * 2 * t * d * itemsize      # row+col slabs, double-buffered
        temps = 8 * t * t * 4                 # gram/l2/exp-chain f32 temporaries
        return slabs + temps <= budget

    best = None
    best_div_b = None
    t = 8
    while t <= min(cap, n):
        if n % t == 0 and fits(t):
            best = t
            if batch % t == 0:
                best_div_b = t
        t += 8
    if best_div_b is not None and (best is None or 2 * best_div_b >= best):
        return best_div_b
    if best is not None:
        return best
    # TODO(synk): large n with no multiple-of-8 divisor may exceed VMEM here.
    return n


# ---------------------------------------------------------------------------
# Wrapper.
# ---------------------------------------------------------------------------
def mmd_loss(source, target, kernel_type="rbf", kernel_mul=2.0, kernel_num=5,
             use_bf16_gram=True, tile=None):
    """Pallas TPU implementation of MMD_loss.forward. Returns a scalar f32."""
    B, D = source.shape
    assert target.shape == (B, D), "source/target must have identical shapes"
    assert kernel_num >= 1
    source = source.astype(jnp.float32)
    target = target.astype(jnp.float32)

    vmem_limit = _vmem_limit_bytes()
    budget = int(vmem_limit * 0.7)
    smem_spec = pl.BlockSpec(memory_space=pltpu.MemorySpace.SMEM)

    if kernel_type == "linear":
        tb = _pick_rows_tile(B, D, 4, budget // 2)
        out = pl.pallas_call(
            functools.partial(_mmd_linear_kernel, batch=B),
            out_shape=jax.ShapeDtypeStruct((1, 1), jnp.float32),
            grid=(B // tb,),
            in_specs=[pl.BlockSpec((tb, D), lambda i: (i, 0)),
                      pl.BlockSpec((tb, D), lambda i: (i, 0))],
            out_specs=pl.BlockSpec((1, 1), lambda i: (0, 0)),
            scratch_shapes=[pltpu.VMEM((1, D), jnp.float32)],
            compiler_params=pltpu.CompilerParams(
                dimension_semantics=("arbitrary",),
                vmem_limit_bytes=vmem_limit),
        )(source, target)
        return out[0, 0]

    # ---------------- rbf branch ----------------
    n = 2 * B
    total = jnp.concatenate([source, target], axis=0)           # (n, D)
    # Center by the column mean: invariant for all pairwise distances, restores
    # f32 accuracy of the analytic bandwidth and the Gram-identity l2.
    total = total - jnp.mean(total, axis=0, keepdims=True)
    # Pad the lane axis to a multiple of 128 (zero columns change nothing).
    d_pad = ((D + 127) // 128) * 128
    if d_pad != D:
        total = jnp.pad(total, ((0, 0), (0, d_pad - D)))

    # ---- Pass 1: row norms + analytic bandwidth statistic (f32). ----
    tile1 = _pick_rows_tile(n, d_pad, 4, budget)
    stats, norms = pl.pallas_call(
        functools.partial(_bw_stats_kernel, n=n),
        out_shape=(jax.ShapeDtypeStruct((1, 1), jnp.float32),
                   jax.ShapeDtypeStruct((n, 1), jnp.float32)),
        grid=(n // tile1,),
        in_specs=[pl.BlockSpec((tile1, d_pad), lambda i: (i, 0))],
        out_specs=(pl.BlockSpec((1, 1), lambda i: (0, 0)),
                   pl.BlockSpec((tile1, 1), lambda i: (i, 0))),
        scratch_shapes=[pltpu.VMEM((1, d_pad), jnp.float32)],
        compiler_params=pltpu.CompilerParams(
            dimension_semantics=("arbitrary",),
            vmem_limit_bytes=vmem_limit),
    )(total)

    l2_sum = stats[0, 0]
    bandwidth = l2_sum / float(n * n - n)
    bandwidth = bandwidth / (float(kernel_mul) ** (kernel_num // 2))

    pow2_path = float(kernel_mul) == 2.0
    if pow2_path:
        coefs = jnp.reshape(
            -1.0 / (bandwidth * float(kernel_mul) ** (kernel_num - 1)), (1,))
    else:
        scales = float(kernel_mul) ** jnp.arange(kernel_num, dtype=jnp.float32)
        coefs = -1.0 / (bandwidth * scales)
    coefs = coefs.astype(jnp.float32)

    # ---- Pass 2: symmetric (upper-triangular) block pairs. ----
    gram_dtype = jnp.bfloat16 if use_bf16_gram else jnp.float32
    gram_itemsize = 2 if use_bf16_gram else 4
    if tile is None:
        tile = _pick_pair_tile(B, n, d_pad, gram_itemsize, budget)
    assert n % tile == 0 and (tile % 8 == 0 or tile == n), \
        "tile must divide 2*B and be a multiple of 8 (or equal 2*B)"
    scalar_sign = (B % tile == 0)
    n_blk = n // tile

    bi_np, bj_np = np.triu_indices(n_blk)
    bi = jnp.asarray(bi_np, dtype=jnp.int32)
    bj = jnp.asarray(bj_np, dtype=jnp.int32)
    num_pairs = int(bi_np.shape[0])

    total_g = total.astype(gram_dtype)                  # bf16 (or f32) for MXU
    norms_r = norms.reshape(n_blk, 1, tile)             # lane-dense col norms

    kern = functools.partial(
        _mmd_rbf_pair_kernel, batch=B, tile=tile,
        kernel_num=int(kernel_num), pow2_path=pow2_path,
        scalar_sign=scalar_sign)

    n_exp = 1 if pow2_path else int(kernel_num)
    cost = pl.CostEstimate(
        flops=num_pairs * (2 * tile * tile * d_pad + 12 * tile * tile),
        transcendentals=num_pairs * tile * tile * n_exp,
        bytes_accessed=num_pairs * (2 * tile * d_pad * gram_itemsize
                                    + 12 * tile))

    partials = pl.pallas_call(
        kern,
        out_shape=jax.ShapeDtypeStruct((num_pairs, 1, tile), jnp.float32),
        grid_spec=pltpu.PrefetchScalarGridSpec(
            num_scalar_prefetch=2,
            grid=(num_pairs,),
            in_specs=[
                smem_spec,                                                # coefs
                pl.BlockSpec((tile, 1), lambda p, ib, jb: (ib[p], 0)),    # a_sq
                pl.BlockSpec((1, 1, tile), lambda p, ib, jb: (jb[p], 0, 0)),  # b_sq
                pl.BlockSpec((tile, d_pad), lambda p, ib, jb: (ib[p], 0)),    # rows
                pl.BlockSpec((tile, d_pad), lambda p, ib, jb: (jb[p], 0)),    # cols
            ],
            out_specs=pl.BlockSpec((1, 1, tile), lambda p, ib, jb: (p, 0, 0)),
        ),
        compiler_params=pltpu.CompilerParams(
            dimension_semantics=("parallel",),   # independent pairs; v7x megacore
            vmem_limit_bytes=vmem_limit),
        cost_estimate=cost,
    )(bi, bj, coefs, norms, norms_r, total_g, total_g)

    return jnp.sum(partials) * (1.0 / float(B * B))


# ---------------------------------------------------------------------------
# Pure-JAX reference mirroring the PyTorch code (sanity check only).
# ---------------------------------------------------------------------------
def _mmd_rbf_reference(source, target, kernel_mul=2.0, kernel_num=5):
    B = source.shape[0]
    total = jnp.concatenate([source, target], axis=0).astype(jnp.float32)
    n = total.shape[0]
    diff = total[None, :, :] - total[:, None, :]
    l2 = jnp.sum(diff * diff, axis=2)
    bw = jnp.sum(l2) / (n * n - n)
    bw = bw / (kernel_mul ** (kernel_num // 2))
    kernels = sum(jnp.exp(-l2 / (bw * kernel_mul ** i)) for i in range(kernel_num))
    XX = jnp.mean(kernels[:B, :B])
    YY = jnp.mean(kernels[B:, B:])
    XY = jnp.mean(kernels[:B, B:])
    YX = jnp.mean(kernels[B:, :B])
    return XX + YY - XY - YX


if __name__ == "__main__":
    key = jax.random.PRNGKey(0)
    k1, k2, k3, k4 = jax.random.split(key, 4)

    # Case 1: B, D that exercise the multi-pair grid with scalar quadrant sign.
    B, D = 16, 64
    source = jax.random.normal(k1, (B, D), dtype=jnp.float32)
    target = jax.random.normal(k2, (B, D), dtype=jnp.float32) + 0.5

    ref = jax.block_until_ready(_mmd_rbf_reference(source, target))

    # Default path: auto tile, bf16 Gram (looser tolerance vs f32 reference).
    loss_bf16 = jax.block_until_ready(mmd_loss(source, target))
    assert np.allclose(np.asarray(loss_bf16), np.asarray(ref),
                       rtol=2e-2, atol=2e-2), (
        f"rbf mismatch (bf16 gram): pallas={loss_bf16} ref={ref}")

    # f32 Gram, forced tile=8 -> 4x4 block grid / 10 triangular pairs.
    loss_f32 = jax.block_until_ready(
        mmd_loss(source, target, use_bf16_gram=False, tile=8))
    assert np.allclose(np.asarray(loss_f32), np.asarray(ref),
                       rtol=1e-3, atol=1e-3), (
        f"rbf mismatch (f32 gram, tiled): pallas={loss_f32} ref={ref}")

    # Case 2: B not a multiple of the tile (mask-sign path), D padded to 128,
    # non-power-of-two kernel_mul (separate exp per kernel).
    B2, D2 = 12, 20
    s2 = jax.random.normal(k3, (B2, D2), dtype=jnp.float32)
    t2 = jax.random.normal(k4, (B2, D2), dtype=jnp.float32) - 0.3
    ref2 = jax.block_until_ready(
        _mmd_rbf_reference(s2, t2, kernel_mul=1.5, kernel_num=3))
    loss2 = jax.block_until_ready(
        mmd_loss(s2, t2, kernel_mul=1.5, kernel_num=3,
                 use_bf16_gram=False, tile=8))
    assert np.allclose(np.asarray(loss2), np.asarray(ref2),
                       rtol=1e-3, atol=1e-3), (
        f"rbf mismatch (mask sign / general mul): pallas={loss2} ref={ref2}")

    # Linear branch.
    lin = jax.block_until_ready(mmd_loss(source, target, kernel_type="linear"))
    delta = np.asarray(source).mean(0) - np.asarray(target).mean(0)
    assert np.allclose(np.asarray(lin), delta @ delta, rtol=1e-4, atol=1e-4), (
        f"linear mismatch: pallas={lin} ref={delta @ delta}")

    print("KERNEL_OK")
</pallas_src>

<mosaic_0001>
module attributes {stable_mosaic.version = 11 : i64} {
  func.func @_bw_stats_kernel(%arg0: i32, %arg1: memref<32x128xf32, #tpu.memory_space<vmem>>, %arg2: memref<1x1xf32, #tpu.memory_space<vmem>>, %arg3: memref<32x1xf32, #tpu.memory_space<vmem>>, %arg4: memref<1x128xf32, #tpu.memory_space<vmem>>) attributes {dimension_semantics = [#tpu.dimension_semantics<arbitrary>], iteration_bounds = array<i64: 1>, scalar_prefetch = 0 : i64, scratch_operands = 1 : i64, tpu.core_type = #tpu.core_type<tc>, window_params = [{transform_indices = @transform_0, window_bounds = array<i64: 32, 128>}, {pipeline_mode = #tpu.pipeline_mode<synchronous>, transform_indices = @transform_1, window_bounds = array<i64: 1, 1>}, {transform_indices = @transform_2, window_bounds = array<i64: 32, 1>}]} {
    %c0_i32 = arith.constant 0 : i32
    %0 = arith.cmpi eq, %arg0, %c0_i32 : i32
    %1 = arith.extui %0 : i1 to i32
    %c0_i32_0 = arith.constant 0 : i32
    %2 = arith.cmpi ne, %1, %c0_i32_0 : i32
    scf.if %2 {
      %cst_16 = arith.constant 0.000000e+00 : f32
      %24 = vector.broadcast %cst_16 : f32 to vector<1x1xf32>
      %c0_17 = arith.constant 0 : index
      %c0_18 = arith.constant 0 : index
      %25 = vector.load %arg2[%c0_17, %c0_18] : memref<1x1xf32, #tpu.memory_space<vmem>>, vector<1x1xf32>
      tpu.vector_store %arg2[%c0_17, %c0_18], %24 {strides = array<i32>} : memref<1x1xf32, #tpu.memory_space<vmem>>, vector<1x1xf32>,
      %cst_19 = arith.constant 0.000000e+00 : f32
      %26 = vector.broadcast %cst_19 : f32 to vector<1x128xf32>
      %c0_20 = arith.constant 0 : index
      %c0_21 = arith.constant 0 : index
      %27 = vector.load %arg4[%c0_20, %c0_21] : memref<1x128xf32, #tpu.memory_space<vmem>>, vector<1x128xf32>
      tpu.vector_store %arg4[%c0_20, %c0_21], %26 {strides = array<i32>} : memref<1x128xf32, #tpu.memory_space<vmem>>, vector<1x128xf32>,
    } else {
    }
    %c0 = arith.constant 0 : index
    %c0_1 = arith.constant 0 : index
    %3 = vector.load %arg1[%c0, %c0_1] : memref<32x128xf32, #tpu.memory_space<vmem>>, vector<32x128xf32>
    %4 = arith.mulf %3, %3 : vector<32x128xf32>
    %cst = arith.constant dense<0.000000e+00> : vector<32xf32>
    %5 = vector.multi_reduction <add>, %4, %cst [1] : vector<32x128xf32> to vector<32xf32>
    %6 = vector.shape_cast %5 : vector<32xf32> to vector<32x1xf32>
    %c0_2 = arith.constant 0 : index
    %c0_3 = arith.constant 0 : index
    %7 = vector.load %arg3[%c0_2, %c0_3] : memref<32x1xf32, #tpu.memory_space<vmem>>, vector<32x1xf32>
    tpu.vector_store %arg3[%c0_2, %c0_3], %6 {strides = array<i32>} : memref<32x1xf32, #tpu.memory_space<vmem>>, vector<32x1xf32>,
    %c0_4 = arith.constant 0 : index
    %c0_5 = arith.constant 0 : index
    %8 = vector.load %arg2[%c0_4, %c0_5] : memref<1x1xf32, #tpu.memory_space<vmem>>, vector<1x1xf32>
    %9 = vector.shape_cast %6 : vector<32x1xf32> to vector<1x32x1xf32>
    %cst_6 = arith.constant dense<0.000000e+00> : vector<1xf32>
    %10 = vector.multi_reduction <add>, %9, %cst_6 [1, 2] : vector<1x32x1xf32> to vector<1xf32>
    %11 = vector.shape_cast %10 : vector<1xf32> to vector<1x1x1xf32>
    %12 = vector.extract %11[0, 0, 0] : f32 from vector<1x1x1xf32>
    %13 = vector.broadcast %12 : f32 to vector<1x1xf32>
    %14 = arith.addf %8, %13 : vector<1x1xf32>
    %c0_7 = arith.constant 0 : index
    %c0_8 = arith.constant 0 : index
    %15 = vector.load %arg2[%c0_7, %c0_8] : memref<1x1xf32, #tpu.memory_space<vmem>>, vector<1x1xf32>
    tpu.vector_store %arg2[%c0_7, %c0_8], %14 {strides = array<i32>} : memref<1x1xf32, #tpu.memory_space<vmem>>, vector<1x1xf32>,
    %c0_9 = arith.constant 0 : index
    %c0_10 = arith.constant 0 : index
    %16 = vector.load %arg4[%c0_9, %c0_10] : memref<1x128xf32, #tpu.memory_space<vmem>>, vector<1x128xf32>
    %cst_11 = arith.constant dense<0.000000e+00> : vector<128xf32>
    %17 = vector.multi_reduction <add>, %3, %cst_11 [0] : vector<32x128xf32> to vector<128xf32>
    %18 = vector.shape_cast %17 : vector<128xf32> to vector<1x128xf32>
    %19 = arith.addf %16, %18 : vector<1x128xf32>
    %c0_12 = arith.constant 0 : index
    %c0_13 = arith.constant 0 : index
    %20 = vector.load %arg4[%c0_12, %c0_13] : memref<1x128xf32, #tpu.memory_space<vmem>>, vector<1x128xf32>
    tpu.vector_store %arg4[%c0_12, %c0_13], %19 {strides = array<i32>} : memref<1x128xf32, #tpu.memory_space<vmem>>, vector<1x128xf32>,
    %c0_i32_14 = arith.constant 0 : i32
    %21 = arith.cmpi eq, %arg0, %c0_i32_14 : i32
    %22 = arith.extui %21 : i1 to i32
    %c0_i32_15 = arith.constant 0 : i32
    %23 = arith.cmpi ne, %22, %c0_i32_15 : i32
    scf.if %23 {
      %c0_16 = arith.constant 0 : index
      %c0_17 = arith.constant 0 : index
      %24 = vector.load %arg4[%c0_16, %c0_17] : memref<1x128xf32, #tpu.memory_space<vmem>>, vector<1x128xf32>
      %c0_18 = arith.constant 0 : index
      %c0_19 = arith.constant 0 : index
      %25 = vector.load %arg2[%c0_18, %c0_19] : memref<1x1xf32, #tpu.memory_space<vmem>>, vector<1x1xf32>
      %cst_20 = arith.constant 6.400000e+01 : f32
      %26 = vector.broadcast %cst_20 : f32 to vector<1x1xf32>
      %27 = arith.mulf %26, %25 : vector<1x1xf32>
      %28 = arith.mulf %24, %24 : vector<1x128xf32>
      %29 = vector.shape_cast %28 : vector<1x128xf32> to vector<1x1x128xf32>
      %cst_21 = arith.constant dense<0.000000e+00> : vector<1xf32>
      %30 = vector.multi_reduction <add>, %29, %cst_21 [1, 2] : vector<1x1x128xf32> to vector<1xf32>
      %31 = vector.shape_cast %30 : vector<1xf32> to vector<1x1x1xf32>
      %32 = vector.extract %31[0, 0, 0] : f32 from vector<1x1x1xf32>
      %33 = vector.broadcast %32 : f32 to vector<1x1xf32>
      %cst_22 = arith.constant 2.000000e+00 : f32
      %34 = vector.broadcast %cst_22 : f32 to vector<1x1xf32>
      %35 = arith.mulf %34, %33 : vector<1x1xf32>
      %36 = arith.subf %27, %35 : vector<1x1xf32>
      %c0_23 = arith.constant 0 : index
      %c0_24 = arith.constant 0 : index
      %37 = vector.load %arg2[%c0_23, %c0_24] : memref<1x1xf32, #tpu.memory_space<vmem>>, vector<1x1xf32>
      tpu.vector_store %arg2[%c0_23, %c0_24], %36 {strides = array<i32>} : memref<1x1xf32, #tpu.memory_space<vmem>>, vector<1x1xf32>,
    } else {
    }
    return
  }
  func.func @transform_0(%arg0: i32) -> (i32, i32) {
    %c0_i32 = arith.constant 0 : i32
    %c0_i32_0 = arith.constant 0 : i32
    return %arg0, %c0_i32 : i32, i32
  }
  func.func @transform_1(%arg0: i32) -> (i32, i32) {
    %c0_i32 = arith.constant 0 : i32
    %c0_i32_0 = arith.constant 0 : i32
    %c0_i32_1 = arith.constant 0 : i32
    return %c0_i32, %c0_i32_0 : i32, i32
  }
  func.func @transform_2(%arg0: i32) -> (i32, i32) {
    %c0_i32 = arith.constant 0 : i32
    %c0_i32_0 = arith.constant 0 : i32
    return %arg0, %c0_i32 : i32, i32
  }
}

</mosaic_0001>

<llo_original>
// kernel: tpu_custom_call.1
$region0: #{tpu_custom_call.1}
  #allocation0 [shape = 'u32[]', space=smem, size = 0x4, offset = 0x4, fixed_abs, tag = 'smem constant byte address 0x4 - core index']
  #allocation1 [shape = 'u32[144,128]{1,0:T(1,128)}', space=vmem, size = 0x12000, scoped, tag = 'internal scratch']
  #allocation2 [shape = 'f32[1,128]{1,0:T(1,128)}', space=vmem, size = 0x200, scoped, tag = 'scratch operand']
  %s0 = inlined_call_operand.hbm [shape: f32[32,128], index: 0, kind: input, shape index: {}]
  %s1 = inlined_call_operand.hbm [shape: f32[1,1], index: 1, kind: output, shape index: {0}]
  %s2 = inlined_call_operand.vmem [shape: f32[32,1], index: 2, kind: output, shape index: {1}]
  %3 = xla_tuple %s1, %s2
  %s4 = sld [smem:[#allocation0]]
  $region34: #{tpu_custom_call.1} parent=0
    _
  %s6 = ssub.s32 1, %s4
  %s7 = scalar_select 0, %s6, %s4
  $region1: #{tpu_custom_call.1} parent=0
    #allocation3 [shape = 'u8[16384]{0}', space=vmem, size = 0x4000, scoped, tag = 'input window, operand 0, single buffered']
    #allocation4 [shape = 's32[1]{0}', space=sflag, size = 0x4, scoped, tag = 'scoped memory for tpu_custom_call.1']
    #allocation5 [shape = 's32[1]{0}', space=sflag, size = 0x4, scoped, tag = 'scoped memory for tpu_custom_call.1']
    #allocation6 [shape = 'u8[512]{0}', space=vmem, size = 0x400, scoped, tag = 'output window, operand 0, single buffered']
    %8 = vsyncpa [#allocation4], 0
    %9 = vsyncpa [#allocation5], 0
    // Predicated region
    $region2: #{tpu_custom_call.1} parent=1 // pred_check
      _
    $region3: #{tpu_custom_call.1} parent=1 // pred_check_branch
      %11 = sbr.rel (0) target = $region5
    $region4: #{tpu_custom_call.1} parent=1 // pred_region
      %s13 = ssub.s32 512, 512
      %14 = vsyncadd [#allocation4], %s13
      %s15 = sshll.u32 [#allocation3], 4
      %s16 = int_to_ptr.vmem [resolvable:$true] %s15
      %21 = dma.hbm_to_vmem [thread:$0]  %s0, 512, %s16, [#allocation4], 128, 128, 8
    $region5: #{tpu_custom_call.1} parent=1 // pred_fallthru
      _
    // Predicated region
    $region6: #{tpu_custom_call.1} parent=1 // pred_check
      _
    $region7: #{tpu_custom_call.1} parent=1 // pred_check_branch
      %23 = sbr.rel (0) target = $region9
    $region8: #{tpu_custom_call.1} parent=1 // pred_region
      %24 = dma.done [#allocation4], 512
    $region9: #{tpu_custom_call.1} parent=1 // pred_fallthru
      _
    %p25 = scmp.eq.s32.totalorder 0, 0
    // Predicated region
    $region10: #{tpu_custom_call.1} parent=1 // pred_check
      %p26 = pneg %p25
    $region11: #{tpu_custom_call.1} parent=1 // pred_check_branch
      %28 = sbr.rel (%p26) target = $region13
    $region12: #{tpu_custom_call.1} parent=1 // pred_region
      %vm29 = vcmask 0
      %30 = vst.msk [vmem:[#allocation6] sm:$0x1] %vm29, 0.0
      %31 = vst [vmem:[#allocation2] sm:$0x1] 0.0
    $region13: #{tpu_custom_call.1} parent=1 // pred_fallthru
      _
    %v32 = vld [vmem:[#allocation3] sm:$0xff]
    %v33 = vld [vmem:[#allocation3 + $0x8] sm:$0xff]
    %v34 = vld [vmem:[#allocation3 + $0x10] sm:$0xff]
    %v35 = vld [vmem:[#allocation3 + $0x18] sm:$0xff]
    %v36 = vmul.f32 %v32, %v32
    %v37 = vmul.f32 %v33, %v33
    %v38 = vmul.f32 %v34, %v34
    %v39 = vmul.f32 %v35, %v35
    %40 = vadd.xlane.f32.xlu0 %v36
    %v41 = vpop.xlane.xlu0 %40
    %42 = vadd.xlane.f32.xlu0 %v37
    %v43 = vpop.xlane.xlu0 %42
    %44 = vadd.xlane.f32.xlu0 %v38
    %v45 = vpop.xlane.xlu0 %44
    %46 = vadd.xlane.f32.xlu0 %v39
    %v47 = vpop.xlane.xlu0 %46
    %vm48 = vcmask 7168
    %49 = vst.msk [vmem:[%s2] sm:$0xff] %vm48, %v41
    %50 = vst.msk [vmem:[%s2 + $0x8] sm:$0xff] %vm48, %v43
    %51 = vst.msk [vmem:[%s2 + $0x10] sm:$0xff] %vm48, %v45
    %52 = vst.msk [vmem:[%s2 + $0x18] sm:$0xff] %vm48, %v47
    %v53 = vld [vmem:[#allocation6] sm:$0x1]
    %v54 = vsel %vm48, %v41, 0.0
    %v55 = vsel %vm48, %v43, 0.0
    %v56 = vadd.f32 %v54, %v55
    %v57 = vsel %vm48, %v45, 0.0
    %v58 = vadd.f32 %v56, %v57
    %v59 = vsel %vm48, %v47, 0.0
    %v60 = vadd.f32 %v58, %v59
    %61 = vadd.xlane.f32.xlu0 %v60
    %v62 = vpop.xlane.xlu0 %61
    %v63 = vrot.slane %v62, 4
    %v64 = vadd.f32 %v62, %v63
    %v65 = vrot.slane %v64, 2
    %v66 = vadd.f32 %v64, %v65
    %v67 = vrot.slane %v66, 1
    %v68 = vadd.f32 %v66, %v67
    %s69 = vtos %v68
    %v70 = vstv %s69
    %v71 = vadd.f32 %v53, %v70
    %vm72 = vcmask 0
    %73 = vst.msk [vmem:[#allocation6] sm:$0x1] %vm72, %v71
    %v74 = vld [vmem:[#allocation2] sm:$0x1]
    %v75 = vadd.f32 %v32, %v33
    %v76 = vadd.f32 %v75, %v34
    %v77 = vadd.f32 %v76, %v35
    %v78 = vrot.slane %v77, 4
    %v79 = vadd.f32 %v77, %v78
    %v80 = vrot.slane %v79, 2
    %v81 = vadd.f32 %v79, %v80
    %v82 = vrot.slane %v81, 1
    %v83 = vadd.f32 %v81, %v82
    %v84 = vadd.f32 %v74, %v83
    %85 = vst [vmem:[#allocation2] sm:$0x1] %v84
    // Predicated region
    $region14: #{tpu_custom_call.1} parent=1 // pred_check
      %p86 = pneg %p25
    $region15: #{tpu_custom_call.1} parent=1 // pred_check_branch
      %88 = sbr.rel (%p86) target = $region17
    $region16: #{tpu_custom_call.1} parent=1 // pred_region
      %v89 = vld [vmem:[#allocation2] sm:$0x1]
      %v90 = vld [vmem:[#allocation6] sm:$0x1]
      %v91 = vmul.f32 %v90, 64.0
      %v92 = vmul.f32 %v89, %v89
      %vm93 = vcmask 1040384
      %v94 = vsel %vm93, %v92, 0.0
      %95 = vadd.xlane.f32.xlu0 %v94
      %v96 = vpop.xlane.xlu0 %95
      %v97 = vrot.slane %v96, 4
      %v98 = vadd.f32 %v96, %v97
      %v99 = vrot.slane %v98, 2
      %v100 = vadd.f32 %v98, %v99
      %v101 = vrot.slane %v100, 1
      %v102 = vadd.f32 %v100, %v101
      %s103 = vtos %v102
      %v104 = vstv %s103
      %v105 = vmul.f32 %v104, 2.0
      %v106 = vsub.f32 %v91, %v105
      %107 = vst.msk [vmem:[#allocation6] sm:$0x1] %vm72, %v106
    $region17: #{tpu_custom_call.1} parent=1 // pred_fallthru
      _
    // Predicated region
    $region18: #{tpu_custom_call.1} parent=1 // pred_check
      _
    $region19: #{tpu_custom_call.1} parent=1 // pred_check_branch
      %109 = sbr.rel (0) target = $region21
    $region20: #{tpu_custom_call.1} parent=1 // pred_region
      %s111 = ssub.s32 16, 16
      %112 = vsyncadd [#allocation5], %s111
      %s114 = sshll.u32 [#allocation6], 4
      %s115 = int_to_ptr.vmem [resolvable:$true] %s114
      %117 = dma.vmem_to_hbm [thread:$0]  %s115, 16, %s1, [#allocation5]
    $region21: #{tpu_custom_call.1} parent=1 // pred_fallthru
      _
    // Predicated region
    $region22: #{tpu_custom_call.1} parent=1 // pred_check
      _
    $region23: #{tpu_custom_call.1} parent=1 // pred_check_branch
      %119 = sbr.rel (0) target = $region25
    $region24: #{tpu_custom_call.1} parent=1 // pred_region
      _
    $region25: #{tpu_custom_call.1} parent=1 // pred_fallthru
      _
    // Predicated region
    $region26: #{tpu_custom_call.1} parent=1 // pred_check
      _
    $region27: #{tpu_custom_call.1} parent=1 // pred_check_branch
      %121 = sbr.rel (0) target = $region29
    $region28: #{tpu_custom_call.1} parent=1 // pred_region
      %122 = dma.done [#allocation5], 16
    $region29: #{tpu_custom_call.1} parent=1 // pred_fallthru
      _
    // Predicated region
    $region30: #{tpu_custom_call.1} parent=1 // pred_check
      _
    $region31: #{tpu_custom_call.1} parent=1 // pred_check_branch
      %124 = sbr.rel (0) target = $region33
    $region32: #{tpu_custom_call.1} parent=1 // pred_region
      _
    $region33: #{tpu_custom_call.1} parent=1 // pred_fallthru
      _
    %125 = vsyncpa [#allocation4], 1
    %126 = vsyncpa [#allocation5], 1

</llo_original>
